<compile_context>
chip_gen: v7x
topology: tpu7x:2x2x1
jax: 0.10.0
libtpu: 0.0.40
codegen_flags: <defaults>
</compile_context>

<pallas_src>
import functools

import jax
import jax.numpy as jnp
from jax.experimental import pallas as pl
from jax.experimental.pallas import tpu as pltpu


def _round_up(a, b):
    return (a + b - 1) // b * b


def _loss_with_distortion_kernel(lam_ref, x_ref, y_ref, p_ref, out_ref, *, batch, n_protos):
    # ---- cross-entropy partial sum for this batch tile ----
    x = x_ref[...].astype(jnp.float32)                              # [tb, C]
    y = y_ref[...]                                                  # [tb, 1] int32 (-1 => padded row)
    m = jnp.max(x, axis=-1, keepdims=True)                          # [tb, 1]
    z = x - m
    lse = jnp.log(jnp.sum(jnp.exp(z), axis=-1, keepdims=True))      # [tb, 1]
    col = jax.lax.broadcasted_iota(jnp.int32, z.shape, 1)           # [tb, C]
    z_lbl = jnp.sum(jnp.where(col == y, z, 0.0), axis=-1, keepdims=True)  # [tb, 1] z at label
    valid = (y >= 0).astype(jnp.float32)                            # mask padded rows
    partial = jnp.sum(valid * (lse - z_lbl)) / jnp.float32(batch)
    out_ref[...] = jnp.full(out_ref.shape, partial, jnp.float32)

    # ---- distortion term: computed once, on the first batch tile only ----
    @pl.when(pl.program_id(0) == 0)
    def _():
        lam = lam_ref[0, 0]
        p = p_ref[...].astype(jnp.float32)                          # [K, D]
        sq = jnp.sum(p * p)                                         # sum_i ||p_i||^2
        s = jnp.sum(p, axis=0, keepdims=True)                       # [1, D]  (sum_ij p_i.p_j = ||s||^2)
        k = jnp.float32(n_protos)
        dist = (2.0 * k * sq - 2.0 * jnp.sum(s * s)) / (k * k)
        out_ref[...] = out_ref[...] + lam * dist


def loss_with_distortion(x, y, protos, lambda_=1.0):
    """x: [B, C] float logits (f32 or bf16), y: [B] int labels, protos: [K, D] float."""
    B, C = x.shape
    K, D = protos.shape

    # Batch tile: multiple of 8 sublanes; large tiles (~512 rows) approach HBM roofline.
    # NOTE: on v7x (64 MiB VMEM) keep tile_b*C*bytes*2 buffers well under the scoped limit;
    # raise vmem_limit_bytes in CompilerParams if you bump tile_b for huge C.
    tile_b = min(512, _round_up(B, 8))
    B_pad = _round_up(B, tile_b)
    nb = B_pad // tile_b

    pad = B_pad - B
    if pad:
        x = jnp.pad(x, ((0, pad), (0, 0)))
        y = jnp.pad(y, (0, pad), constant_values=-1)   # sentinel => masked in-kernel
    y2 = y.reshape(B_pad, 1).astype(jnp.int32)
    lam = jnp.full((1, 1), lambda_, dtype=jnp.float32)

    kernel = functools.partial(_loss_with_distortion_kernel, batch=B, n_protos=K)

    partials = pl.pallas_call(
        kernel,
        out_shape=jax.ShapeDtypeStruct((nb, 8, 128), jnp.float32),
        grid=(nb,),
        in_specs=[
            pl.BlockSpec(memory_space=pltpu.SMEM),            # lambda scalar  [1, 1]
            pl.BlockSpec((tile_b, C), lambda i: (i, 0)),      # logits tile    [tile_b, C]
            pl.BlockSpec((tile_b, 1), lambda i: (i, 0)),      # labels tile    [tile_b, 1]
            pl.BlockSpec((K, D), lambda i: (0, 0)),           # protos (whole, reused)
        ],
        out_specs=pl.BlockSpec((1, 8, 128), lambda i: (i, 0, 0)),  # per-block partial
        compiler_params=pltpu.CompilerParams(
            dimension_semantics=("parallel",)),               # shards across TCs on v7x
    )(lam, x, y2, protos)

    # Every lane of a block holds the same partial value; block 0 also carries lambda*dist.
    return jnp.sum(partials[:, 0, 0])


def _reference(x, y, protos, lambda_=1.0):
    # Pure-JAX reference matching the PyTorch semantics.
    logp = jax.nn.log_softmax(x.astype(jnp.float32), axis=-1)
    ce = -jnp.mean(logp[jnp.arange(x.shape[0]), y])
    diff = protos[:, None, :] - protos[None, :, :]
    dist = jnp.mean(jnp.sum(diff * diff, axis=-1))
    return ce + lambda_ * dist


if __name__ == "__main__":
    key = jax.random.PRNGKey(0)
    kx, ky, kp = jax.random.split(key, 3)

    B, C, K, D = 8, 16, 16, 32
    lambda_ = 0.5

    x = jax.random.normal(kx, (B, C), dtype=jnp.float32)
    y = jax.random.randint(ky, (B,), 0, C, dtype=jnp.int32)
    # Deterministic synthetic prototype parameters (module's learnable `protos`).
    protos = 0.1 * jax.random.normal(kp, (K, D), dtype=jnp.float32)

    out = loss_with_distortion(x, y, protos, lambda_=lambda_)
    out = jax.block_until_ready(out)

    ref = _reference(x, y, protos, lambda_=lambda_)
    assert jnp.allclose(out, ref, rtol=1e-5, atol=1e-5), (out, ref)

    # TODO(synk): torch CrossEntropyLoss ignore_index semantics (renormalizing the divisor)
    # are not modeled; all labels are assumed valid, matching the original module's default.

    print("KERNEL_OK")
</pallas_src>

<mosaic_0001>
module attributes {stable_mosaic.version = 11 : i64} {
  func.func @_loss_with_distortion_kernel(%arg0: i32, %arg1: memref<1x1xf32, #tpu.memory_space<smem>>, %arg2: memref<8x16xf32, #tpu.memory_space<vmem>>, %arg3: memref<8x1xi32, #tpu.memory_space<vmem>>, %arg4: memref<16x32xf32, #tpu.memory_space<vmem>>, %arg5: memref<1x8x128xf32, #tpu.memory_space<vmem>>) attributes {dimension_semantics = [#tpu.dimension_semantics<parallel>], iteration_bounds = array<i64: 1>, scalar_prefetch = 0 : i64, scratch_operands = 0 : i64, tpu.core_type = #tpu.core_type<tc>, window_params = [{transform_indices = @transform_0, window_bounds = array<i64: 1, 1>}, {transform_indices = @transform_1, window_bounds = array<i64: 8, 16>}, {transform_indices = @transform_2, window_bounds = array<i64: 8, 1>}, {pipeline_mode = #tpu.pipeline_mode<synchronous>, transform_indices = @transform_3, window_bounds = array<i64: 16, 32>}, {transform_indices = @transform_4, window_bounds = array<i64: 1, 8, 128>}]} {
    %c0 = arith.constant 0 : index
    %c0_0 = arith.constant 0 : index
    %0 = vector.load %arg2[%c0, %c0_0] : memref<8x16xf32, #tpu.memory_space<vmem>>, vector<8x16xf32>
    %c0_1 = arith.constant 0 : index
    %c0_2 = arith.constant 0 : index
    %1 = vector.load %arg3[%c0_1, %c0_2] : memref<8x1xi32, #tpu.memory_space<vmem>>, vector<8x1xi32>
    %cst = arith.constant dense<0xFF800000> : vector<8xf32>
    %2 = vector.multi_reduction <maximumf>, %0, %cst [1] : vector<8x16xf32> to vector<8xf32>
    %3 = vector.shape_cast %2 : vector<8xf32> to vector<8x1xf32>
    %4 = vector.broadcast %3 : vector<8x1xf32> to vector<8x16xf32>
    %5 = arith.subf %0, %4 : vector<8x16xf32>
    %6 = math.exp %5 : vector<8x16xf32>
    %cst_3 = arith.constant dense<0.000000e+00> : vector<8xf32>
    %7 = vector.multi_reduction <add>, %6, %cst_3 [1] : vector<8x16xf32> to vector<8xf32>
    %8 = vector.shape_cast %7 : vector<8xf32> to vector<8x1xf32>
    %9 = math.log %8 : vector<8x1xf32>
    %10 = tpu.iota {dimensions = array<i32: 1>} : vector<8x16xi32>
    %11 = vector.broadcast %1 : vector<8x1xi32> to vector<8x16xi32>
    %12 = arith.cmpi eq, %10, %11 : vector<8x16xi32>
    %cst_4 = arith.constant 0.000000e+00 : f32
    %13 = vector.broadcast %cst_4 : f32 to vector<8x16xf32>
    %14 = arith.select %12, %5, %13 : vector<8x16xi1>, vector<8x16xf32>
    %cst_5 = arith.constant dense<0.000000e+00> : vector<8xf32>
    %15 = vector.multi_reduction <add>, %14, %cst_5 [1] : vector<8x16xf32> to vector<8xf32>
    %16 = vector.shape_cast %15 : vector<8xf32> to vector<8x1xf32>
    %c0_i32 = arith.constant 0 : i32
    %17 = vector.broadcast %c0_i32 : i32 to vector<8x1xi32>
    %18 = arith.cmpi sge, %1, %17 : vector<8x1xi32>
    %19 = arith.extui %18 : vector<8x1xi1> to vector<8x1xi32>
    %20 = arith.sitofp %19 : vector<8x1xi32> to vector<8x1xf32>
    %21 = arith.subf %9, %16 : vector<8x1xf32>
    %22 = arith.mulf %20, %21 : vector<8x1xf32>
    %23 = vector.shape_cast %22 : vector<8x1xf32> to vector<1x8x1xf32>
    %cst_6 = arith.constant dense<0.000000e+00> : vector<1xf32>
    %24 = vector.multi_reduction <add>, %23, %cst_6 [1, 2] : vector<1x8x1xf32> to vector<1xf32>
    %25 = vector.shape_cast %24 : vector<1xf32> to vector<1x1x1xf32>
    %26 = vector.extract %25[0, 0, 0] : f32 from vector<1x1x1xf32>
    %cst_7 = arith.constant 8.000000e+00 : f32
    %27 = arith.divf %26, %cst_7 : f32
    %28 = vector.broadcast %27 : f32 to vector<1x8x128xf32>
    %c0_8 = arith.constant 0 : index
    %c0_9 = arith.constant 0 : index
    %c0_10 = arith.constant 0 : index
    %29 = vector.load %arg5[%c0_8, %c0_9, %c0_10] : memref<1x8x128xf32, #tpu.memory_space<vmem>>, vector<1x8x128xf32>
    tpu.vector_store %arg5[%c0_8, %c0_9, %c0_10], %28 {strides = array<i32>} : memref<1x8x128xf32, #tpu.memory_space<vmem>>, vector<1x8x128xf32>,
    %c0_i32_11 = arith.constant 0 : i32
    %30 = arith.cmpi eq, %arg0, %c0_i32_11 : i32
    %31 = arith.extui %30 : i1 to i32
    %c0_i32_12 = arith.constant 0 : i32
    %32 = arith.cmpi ne, %31, %c0_i32_12 : i32
    scf.if %32 {
      %c0_13 = arith.constant 0 : index
      %c0_14 = arith.constant 0 : index
      %33 = memref.load %arg1[%c0_13, %c0_14] : memref<1x1xf32, #tpu.memory_space<smem>>
      %c0_15 = arith.constant 0 : index
      %c0_16 = arith.constant 0 : index
      %34 = vector.load %arg4[%c0_15, %c0_16] : memref<16x32xf32, #tpu.memory_space<vmem>>, vector<16x32xf32>
      %35 = arith.mulf %34, %34 : vector<16x32xf32>
      %36 = vector.shape_cast %35 : vector<16x32xf32> to vector<1x16x32xf32>
      %cst_17 = arith.constant dense<0.000000e+00> : vector<1xf32>
      %37 = vector.multi_reduction <add>, %36, %cst_17 [1, 2] : vector<1x16x32xf32> to vector<1xf32>
      %38 = vector.shape_cast %37 : vector<1xf32> to vector<1x1x1xf32>
      %39 = vector.extract %38[0, 0, 0] : f32 from vector<1x1x1xf32>
      %cst_18 = arith.constant dense<0.000000e+00> : vector<32xf32>
      %40 = vector.multi_reduction <add>, %34, %cst_18 [0] : vector<16x32xf32> to vector<32xf32>
      %41 = vector.shape_cast %40 : vector<32xf32> to vector<1x32xf32>
      %cst_19 = arith.constant 2.000000e+00 : f32
      %cst_20 = arith.constant 1.600000e+01 : f32
      %42 = arith.mulf %cst_19, %cst_20 : f32
      %43 = arith.mulf %42, %39 : f32
      %44 = arith.mulf %41, %41 : vector<1x32xf32>
      %45 = vector.shape_cast %44 : vector<1x32xf32> to vector<1x1x32xf32>
      %cst_21 = arith.constant dense<0.000000e+00> : vector<1xf32>
      %46 = vector.multi_reduction <add>, %45, %cst_21 [1, 2] : vector<1x1x32xf32> to vector<1xf32>
      %47 = vector.shape_cast %46 : vector<1xf32> to vector<1x1x1xf32>
      %48 = vector.extract %47[0, 0, 0] : f32 from vector<1x1x1xf32>
      %cst_22 = arith.constant 2.000000e+00 : f32
      %49 = arith.mulf %cst_22, %48 : f32
      %50 = arith.subf %43, %49 : f32
      %cst_23 = arith.constant 1.600000e+01 : f32
      %cst_24 = arith.constant 1.600000e+01 : f32
      %51 = arith.mulf %cst_23, %cst_24 : f32
      %52 = arith.divf %50, %51 : f32
      %c0_25 = arith.constant 0 : index
      %c0_26 = arith.constant 0 : index
      %c0_27 = arith.constant 0 : index
      %53 = vector.load %arg5[%c0_25, %c0_26, %c0_27] : memref<1x8x128xf32, #tpu.memory_space<vmem>>, vector<1x8x128xf32>
      %54 = arith.mulf %33, %52 : f32
      %55 = vector.broadcast %54 : f32 to vector<1x8x128xf32>
      %56 = arith.addf %53, %55 : vector<1x8x128xf32>
      %c0_28 = arith.constant 0 : index
      %c0_29 = arith.constant 0 : index
      %c0_30 = arith.constant 0 : index
      %57 = vector.load %arg5[%c0_28, %c0_29, %c0_30] : memref<1x8x128xf32, #tpu.memory_space<vmem>>, vector<1x8x128xf32>
      tpu.vector_store %arg5[%c0_28, %c0_29, %c0_30], %56 {strides = array<i32>} : memref<1x8x128xf32, #tpu.memory_space<vmem>>, vector<1x8x128xf32>,
    } else {
    }
    return
  }
  func.func @transform_0(%arg0: i32) -> (i32, i32) {
    %c0_i32 = arith.constant 0 : i32
    %c0_i32_0 = arith.constant 0 : i32
    %c0_i32_1 = arith.constant 0 : i32
    return %c0_i32, %c0_i32_0 : i32, i32
  }
  func.func @transform_1(%arg0: i32) -> (i32, i32) {
    %c0_i32 = arith.constant 0 : i32
    %c0_i32_0 = arith.constant 0 : i32
    return %arg0, %c0_i32 : i32, i32
  }
  func.func @transform_2(%arg0: i32) -> (i32, i32) {
    %c0_i32 = arith.constant 0 : i32
    %c0_i32_0 = arith.constant 0 : i32
    return %arg0, %c0_i32 : i32, i32
  }
  func.func @transform_3(%arg0: i32) -> (i32, i32) {
    %c0_i32 = arith.constant 0 : i32
    %c0_i32_0 = arith.constant 0 : i32
    %c0_i32_1 = arith.constant 0 : i32
    return %c0_i32, %c0_i32_0 : i32, i32
  }
  func.func @transform_4(%arg0: i32) -> (i32, i32, i32) {
    %c0_i32 = arith.constant 0 : i32
    %c0_i32_0 = arith.constant 0 : i32
    %c0_i32_1 = arith.constant 0 : i32
    return %arg0, %c0_i32, %c0_i32_0 : i32, i32, i32
  }
}

</mosaic_0001>

<llo_original>
// kernel: tpu_custom_call.1
$region0: #{tpu_custom_call.1}
  #allocation0 [shape = 'u32[]', space=smem, size = 0x4, offset = 0x4, fixed_abs, tag = 'smem constant byte address 0x4 - core index']
  #allocation1 [shape = 'u32[144,128]{1,0:T(1,128)}', space=vmem, size = 0x12000, scoped, tag = 'internal scratch']
  #allocation2 [shape = 'f32[1,1]{1,0:T(1,128)S(6)}', space=smem, size = 0x200, scoped, tag = 'scoped memory for tpu_custom_call.1']
  %s0 = inlined_call_operand.<no memory space> [shape: f32[1,1], index: 0, kind: input, shape index: {}]
  %s1 = inlined_call_operand.hbm [shape: f32[8,16], index: 1, kind: input, shape index: {}]
  %s2 = inlined_call_operand.vmem [shape: s32[8,1], index: 2, kind: input, shape index: {}]
  %s3 = inlined_call_operand.vmem [shape: f32[16,32], index: 3, kind: input, shape index: {}]
  %s4 = inlined_call_operand.hbm [shape: f32[1,8,128], index: 4, kind: output, shape index: {}]
  %s5 = sld [smem:[#allocation0]]
  $region34: #{tpu_custom_call.1} parent=0
    _
  %s7 = ssub.s32 1, %s5
  %s8 = scalar_select 0, %s7, %s5
  %9 = sst [smem:[#allocation2]] %s0
  $region1: #{tpu_custom_call.1} parent=0
    #allocation3 [shape = 'u8[4096]{0}', space=vmem, size = 0x1000, scoped, tag = 'input window, operand 1, single buffered']
    #allocation4 [shape = 's32[1]{0}', space=sflag, size = 0x4, scoped, tag = 'scoped memory for tpu_custom_call.1']
    #allocation5 [shape = 's32[1]{0}', space=sflag, size = 0x4, scoped, tag = 'scoped memory for tpu_custom_call.1']
    #allocation6 [shape = 'u8[4096]{0}', space=vmem, size = 0x1000, scoped, tag = 'output window, operand 0, single buffered']
    %10 = vsyncpa [#allocation4], 0
    %11 = vsyncpa [#allocation5], 0
    // Predicated region
    $region2: #{tpu_custom_call.1} parent=1 // pred_check
      _
    $region3: #{tpu_custom_call.1} parent=1 // pred_check_branch
      %13 = sbr.rel (0) target = $region5
    $region4: #{tpu_custom_call.1} parent=1 // pred_region
      _
    $region5: #{tpu_custom_call.1} parent=1 // pred_fallthru
      _
    // Predicated region
    $region6: #{tpu_custom_call.1} parent=1 // pred_check
      _
    $region7: #{tpu_custom_call.1} parent=1 // pred_check_branch
      %15 = sbr.rel (0) target = $region9
    $region8: #{tpu_custom_call.1} parent=1 // pred_region
      %s17 = ssub.s32 128, 128
      %18 = vsyncadd [#allocation4], %s17
      %s20 = sshll.u32 [#allocation3], 4
      %s21 = int_to_ptr.vmem [resolvable:$true] %s20
      %23 = dma.hbm_to_vmem [thread:$0]  %s1, 128, %s21, [#allocation4]
    $region9: #{tpu_custom_call.1} parent=1 // pred_fallthru
      _
    // Predicated region
    $region10: #{tpu_custom_call.1} parent=1 // pred_check
      _
    $region11: #{tpu_custom_call.1} parent=1 // pred_check_branch
      %25 = sbr.rel (0) target = $region13
    $region12: #{tpu_custom_call.1} parent=1 // pred_region
      _
    $region13: #{tpu_custom_call.1} parent=1 // pred_fallthru
      _
    // Predicated region
    $region14: #{tpu_custom_call.1} parent=1 // pred_check
      _
    $region15: #{tpu_custom_call.1} parent=1 // pred_check_branch
      %27 = sbr.rel (0) target = $region17
    $region16: #{tpu_custom_call.1} parent=1 // pred_region
      _
    $region17: #{tpu_custom_call.1} parent=1 // pred_fallthru
      _
    // Predicated region
    $region18: #{tpu_custom_call.1} parent=1 // pred_check
      _
    $region19: #{tpu_custom_call.1} parent=1 // pred_check_branch
      %29 = sbr.rel (0) target = $region21
    $region20: #{tpu_custom_call.1} parent=1 // pred_region
      %30 = dma.done [#allocation4], 128
    $region21: #{tpu_custom_call.1} parent=1 // pred_fallthru
      _
    %v31 = vld [vmem:[#allocation3] sm:$0xff]
    %v32 = vld [vmem:[%s2] sm:$0xff]
    %vm33 = vcmask 130048
    %v34 = vsel %vm33, %v31, -inf
    %35 = vmax.xlane.f32.xlu0 %v34
    %v36 = vpop.xlane.xlu0 %35
    %v37 = vsub.f32 %v31, %v36
    %v38 = vmul.f32 %v37, 1.442695
    %v39 = vpow.pop %v38
    %v40 = vsel %vm33, %v39, 0.0
    %41 = vadd.xlane.f32.xlu0 %v40
    %v42 = vpop.xlane.xlu0 %41
    %v43 = vlog2.pop %v42
    %v44 = vmul.f32 %v43, 0.6931472
    %v45 = vlaneseq
    %v46 = vand.u32 %v45, 127
    %47 = vset.pattern.permute.xlu0 0
    %48 = vperm.xlu0 %47, %v32
    %v49 = vpop.permute.xlu0 %48
    %vm50 = vcmp.eq.s32.totalorder %v46, %v49
    %v51 = vsel %vm50, %v37, 0.0
    %v52 = vsel %vm33, %v51, 0.0
    %53 = vadd.xlane.f32.xlu0 %v52
    %v54 = vpop.xlane.xlu0 %53
    %vm55 = vcmp.ge.s32.totalorder %v32, 0
    %v56 = vsel %vm55, 1, 0
    %v57 = vcvt.s32.f32 %v56
    %v58 = vsub.f32 %v44, %v54
    %v59 = vmul.f32 %v57, %v58
    %vm60 = vcmask 7168
    %v61 = vsel %vm60, %v59, 0.0
    %62 = vadd.xlane.f32.xlu0 %v61
    %v63 = vpop.xlane.xlu0 %62
    %v64 = vrot.slane %v63, 4
    %v65 = vadd.f32 %v63, %v64
    %v66 = vrot.slane %v65, 2
    %v67 = vadd.f32 %v65, %v66
    %v68 = vrot.slane %v67, 1
    %v69 = vadd.f32 %v67, %v68
    %s70 = vtos %v69
    %v71 = vrcp.pop 8.0
    %s72 = vtos %v71
    %s73 = smul.f32 %s70, %s72
    %v74 = vstv %s73
    %75 = vst [vmem:[#allocation6] sm:$0xff] %v74
    %p76 = scmp.eq.s32.totalorder 0, 0
    // Predicated region
    $region22: #{tpu_custom_call.1} parent=1 // pred_check
      %p77 = pneg %p76
    $region23: #{tpu_custom_call.1} parent=1 // pred_check_branch
      %79 = sbr.rel (%p77) target = $region25
    $region24: #{tpu_custom_call.1} parent=1 // pred_region
      %s80 = sld [smem:[#allocation2]]
      %v81 = vld [vmem:[%s3] sm:$0xff]
      %v82 = vld [vmem:[%s3 + $0x8] sm:$0xff]
      %v83 = vmul.f32 %v81, %v81
      %v84 = vmul.f32 %v82, %v82
      %vm85 = vcmask 261120
      %v86 = vsel %vm85, %v83, 0.0
      %v87 = vsel %vm85, %v84, 0.0
      %v88 = vadd.f32 %v86, %v87
      %89 = vadd.xlane.f32.xlu0 %v88
      %v90 = vpop.xlane.xlu0 %89
      %v91 = vrot.slane %v90, 4
      %v92 = vadd.f32 %v90, %v91
      %v93 = vrot.slane %v92, 2
      %v94 = vadd.f32 %v92, %v93
      %v95 = vrot.slane %v94, 1
      %v96 = vadd.f32 %v94, %v95
      %s97 = vtos %v96
      %v98 = vsel %vm85, %v81, 0.0
      %v99 = vsel %vm85, %v82, 0.0
      %v100 = vadd.f32 %v98, %v99
      %v101 = vrot.slane %v100, 4
      %v102 = vadd.f32 %v100, %v101
      %v103 = vrot.slane %v102, 2
      %v104 = vadd.f32 %v102, %v103
      %v105 = vrot.slane %v104, 1
      %v106 = vadd.f32 %v104, %v105
      %s107 = smul.f32 %s97, 32.0
      %v108 = vmul.f32 %v106, %v106
      %vm109 = vcmask 253952
      %v110 = vsel %vm109, %v108, 0.0
      %111 = vadd.xlane.f32.xlu0 %v110
      %v112 = vpop.xlane.xlu0 %111
      %v113 = vrot.slane %v112, 4
      %v114 = vadd.f32 %v112, %v113
      %v115 = vrot.slane %v114, 2
      %v116 = vadd.f32 %v114, %v115
      %v117 = vrot.slane %v116, 1
      %v118 = vadd.f32 %v116, %v117
      %s119 = vtos %v118
      %s120 = smul.f32 %s119, 2.0
      %s121 = ssub.f32 %s107, %s120
      %v122 = vrcp.pop 256.0
      %s123 = vtos %v122
      %s124 = smul.f32 %s121, %s123
      %v125 = vld [vmem:[#allocation6] sm:$0xff]
      %s126 = smul.f32 %s80, %s124
      %v127 = vstv %s126
      %v128 = vadd.f32 %v125, %v127
      %129 = vst [vmem:[#allocation6] sm:$0xff] %v128
    $region25: #{tpu_custom_call.1} parent=1 // pred_fallthru
      _
    // Predicated region
    $region26: #{tpu_custom_call.1} parent=1 // pred_check
      _
    $region27: #{tpu_custom_call.1} parent=1 // pred_check_branch
      %131 = sbr.rel (0) target = $region29
    $region28: #{tpu_custom_call.1} parent=1 // pred_region
      %s133 = ssub.s32 128, 128
      %134 = vsyncadd [#allocation5], %s133
      %s136 = sshll.u32 [#allocation6], 4
      %s137 = int_to_ptr.vmem [resolvable:$true] %s136
      %139 = dma.vmem_to_hbm [thread:$0]  %s137, 128, %s4, [#allocation5]
    $region29: #{tpu_custom_call.1} parent=1 // pred_fallthru
      _
    // Predicated region
    $region30: #{tpu_custom_call.1} parent=1 // pred_check
      _
    $region31: #{tpu_custom_call.1} parent=1 // pred_check_branch
      %141 = sbr.rel (0) target = $region33
    $region32: #{tpu_custom_call.1} parent=1 // pred_region
      %142 = dma.done [#allocation5], 128
    $region33: #{tpu_custom_call.1} parent=1 // pred_fallthru
      _
    %143 = vsyncpa [#allocation4], 1
    %144 = vsyncpa [#allocation5], 1

</llo_original>
